<compile_context>
chip_gen: v7x
topology: tpu7x:2x2x1
jax: 0.10.0
libtpu: 0.0.40
codegen_flags: <defaults>
</compile_context>

<pallas_src>
import math

import jax
import jax.numpy as jnp
from jax import lax
from jax.experimental import pallas as pl
from jax.experimental.pallas import tpu as pltpu

HIDDEN = 250            # as in the PyTorch module
HIDDEN_PAD = 256        # MXU-friendly padded hidden size
DEFAULT_BATCH_TILE = 2048
_VMEM_ACT_BUDGET = 24 * 1024 * 1024   # activation budget under the 32 MiB scoped limit


def _pad_to(n, m):
    return ((n + m - 1) // m) * m


def _elu(v):
    # ELU(alpha=1), f32. Negative branch evaluated on min(v, 0) so the unselected exp
    # never overflows to inf. The extra "- 1.0" is a VPU op riding in otherwise-idle
    # slots (EUP exp is the only transcendental cost).
    # TODO(synk): switch to jnp.expm1 once Mosaic lowering support is confirmed on-device.
    return jnp.where(v > 0.0, v, jnp.exp(jnp.minimum(v, 0.0)) - 1.0)


def mlp_kernel(x_ref, w1_ref, b1_ref, w2_ref, b2_ref, w3_ref, b3_ref, o_ref):
    # TODO(synk): Dropout(p=0.25) layers are inference-mode identities here;
    # training-mode stochastic masking is not implemented.
    #
    # x_ref : (TB, D) f32       per-tile batch rows (last tile may be ragged)
    # w1_ref: (D, 256) bf16     b1_ref: (1, 256) f32
    # w2_ref: (256, 256) bf16   b2_ref: (1, 256) f32
    # w3_ref: (1, 256) bf16     b3_ref: (1, 1) f32
    # o_ref : (1, 1, TB) f32    lane-dense per-tile output row
    x = x_ref[...].astype(jnp.bfloat16)

    h = jnp.dot(x, w1_ref[...], preferred_element_type=jnp.float32) + b1_ref[...]
    h = _elu(h)

    h = jnp.dot(h.astype(jnp.bfloat16), w2_ref[...],
                preferred_element_type=jnp.float32) + b2_ref[...]
    h = _elu(h)

    # Lane-dense final layer: contract the hidden dim of both operands
    # ([1, 256] x [TB, 256]^T -> [1, TB]); avoids a [TB, 1] column store.
    logits = lax.dot_general(
        w3_ref[...], h.astype(jnp.bfloat16), (((1,), (1,)), ((), ())),
        preferred_element_type=jnp.float32,
    )
    out = jnp.exp(logits + b3_ref[...])          # (1, TB) f32
    o_ref[...] = out[None]                       # (1, 1, TB)


def prepare_params(w1, b1, w2, b2, w3, b3, *, hidden_pad=HIDDEN_PAD):
    """Pad/transpose/downcast PyTorch-convention weights ONCE (outside the hot path).

    w1: (H, D), b1: (H,), w2: (H, H), b2: (H,), w3: (1, H), b3: (1,)  [H = 250]
    Returns VMEM-layout params: (w1p [D,Hp] bf16, b1p [1,Hp] f32, w2p [Hp,Hp] bf16,
                                 b2p [1,Hp] f32, w3p [1,Hp] bf16 (row), b3p [1,1] f32).
    """
    H, D = w1.shape
    Hp = max(hidden_pad, _pad_to(H, 128))
    f32, bf16 = jnp.float32, jnp.bfloat16
    w1p = jnp.zeros((D, Hp), f32).at[:, :H].set(jnp.asarray(w1, f32).T).astype(bf16)
    b1p = jnp.zeros((1, Hp), f32).at[0, :H].set(jnp.asarray(b1, f32))
    w2p = jnp.zeros((Hp, Hp), f32).at[:H, :H].set(jnp.asarray(w2, f32).T).astype(bf16)
    b2p = jnp.zeros((1, Hp), f32).at[0, :H].set(jnp.asarray(b2, f32))
    w3p = jnp.zeros((1, Hp), f32).at[0, :H].set(jnp.asarray(w3, f32)[0]).astype(bf16)
    b3p = jnp.asarray(b3, f32).reshape(1, 1)
    return (w1p, b1p, w2p, b2p, w3p, b3p)


def _choose_batch_tile(B, D, Hp, batch_tile):
    # Rows per tile must be a multiple of 8 (f32 sublane).
    tb = _pad_to(max(8, min(batch_tile, B)), 8)
    # v7x has 2 TensorCores: keep >= 2 grid steps on the "parallel" batch axis whenever
    # the batch allows, so both cores get work (neutral on single-TC v5e/v6e).
    tb = min(tb, max(8, _pad_to(pl.cdiv(B, 2), 8)))
    # VMEM budget (v7x: 64 MiB physical / 32 MiB scoped): double-buffered f32 x tile,
    # a few f32/bf16 hidden-activation temporaries, plus double-buffered bf16 weights.
    weight_bytes = 2 * (D * Hp * 2 + Hp * Hp * 2 + Hp * 2) + 2 * 4 * (2 * Hp + 1)
    per_row_bytes = 2 * D * 4 + 4 * Hp * 4 + 16
    max_tb = max(8, ((_VMEM_ACT_BUDGET - weight_bytes) // per_row_bytes) // 8 * 8)
    return int(min(tb, max_tb))


def neural_network_forward(x, prepared_params, *, batch_tile=DEFAULT_BATCH_TILE):
    """x: [B, D] float32. prepared_params: output of prepare_params(). Returns [B, 1]."""
    w1p, b1p, w2p, b2p, w3p, b3p = prepared_params
    B, D = x.shape
    Hp = w1p.shape[1]
    assert w1p.shape[0] == D, (w1p.shape, D)

    TB = _choose_batch_tile(B, D, Hp, batch_tile)
    num_tiles = int(pl.cdiv(B, TB))              # ragged last tile handled by BlockSpec

    rows = num_tiles * TB
    flops = 2 * rows * (D * Hp + Hp * Hp + Hp)
    transcendentals = rows * (2 * Hp + 1)
    bytes_accessed = (4 * B * D                              # x (f32), read once
                      + 2 * (D * Hp + Hp * Hp + Hp)          # bf16 weights
                      + 4 * (2 * Hp + 1)                     # f32 biases
                      + 4 * rows)                            # output

    # NOTE: weight/bias blocks have constant index_maps; single-buffering them
    # (pipeline_mode=pl.Buffered(1)) would save ~0.3 MiB VMEM but is left at the default
    # to avoid depending on pipeline_mode support in the main pallas_call pipeline.
    out_p = pl.pallas_call(
        mlp_kernel,
        out_shape=jax.ShapeDtypeStruct((num_tiles, 1, TB), jnp.float32),
        grid=(num_tiles,),
        in_specs=[
            pl.BlockSpec((TB, D), lambda i: (i, 0)),   # x: tiled over batch
            pl.BlockSpec((D, Hp), lambda i: (0, 0)),   # w1 (bf16): pinned
            pl.BlockSpec((1, Hp), lambda i: (0, 0)),   # b1
            pl.BlockSpec((Hp, Hp), lambda i: (0, 0)),  # w2 (bf16)
            pl.BlockSpec((1, Hp), lambda i: (0, 0)),   # b2
            pl.BlockSpec((1, Hp), lambda i: (0, 0)),   # w3 (bf16 row)
            pl.BlockSpec((1, 1), lambda i: (0, 0)),    # b3
        ],
        out_specs=pl.BlockSpec((1, 1, TB), lambda i: (i, 0, 0)),
        compiler_params=pltpu.CompilerParams(
            dimension_semantics=("parallel",),
            vmem_limit_bytes=32 * 1024 * 1024,
        ),
        cost_estimate=pl.CostEstimate(
            flops=flops,
            transcendentals=transcendentals,
            bytes_accessed=bytes_accessed,
        ),
    )(x, w1p, b1p, w2p, b2p, w3p, b3p)

    # Rows beyond B (ragged last tile) are undefined garbage; drop them here.
    return out_p.reshape(rows)[:B].reshape(B, 1)


# ------------------------- reference + init helpers -------------------------

def _kaiming_uniform(key, fan_out, fan_in):
    # torch.nn.init.kaiming_uniform_ default (a=0, fan_in, leaky_relu): bound = sqrt(6/fan_in)
    bound = math.sqrt(6.0 / fan_in)
    return jax.random.uniform(key, (fan_out, fan_in), jnp.float32, -bound, bound)


def _default_bias(key, fan_out, fan_in):
    # torch.nn.Linear default bias init: U(-1/sqrt(fan_in), 1/sqrt(fan_in))
    bound = 1.0 / math.sqrt(fan_in)
    return jax.random.uniform(key, (fan_out,), jnp.float32, -bound, bound)


def _reference_forward_f32(x, w1, b1, w2, b2, w3, b3):
    h = _elu(x @ w1.T + b1)
    h = _elu(h @ w2.T + b2)
    return jnp.exp(h @ w3.T + b3)


def _reference_forward_bf16(x, w1, b1, w2, b2, w3, b3):
    # Mirrors the kernel's numerics: bf16 dot operands, f32 accumulation & elementwise.
    bf16 = jnp.bfloat16

    def mm(a, w):
        return jnp.dot(a.astype(bf16), jnp.asarray(w, jnp.float32).astype(bf16).T,
                       preferred_element_type=jnp.float32)

    h = _elu(mm(x, w1) + b1)
    h = _elu(mm(h, w2) + b2)
    return jnp.exp(mm(h, w3) + b3)


if __name__ == "__main__":
    key = jax.random.PRNGKey(0)
    D = 32  # stand-in for X_train.shape[1]
    k_x, k_x2, k_x3, k_w1, k_b1, k_w2, k_b2, k_w3 = jax.random.split(key, 8)

    w1 = _kaiming_uniform(k_w1, HIDDEN, D)          # (250, D)
    b1 = _default_bias(k_b1, HIDDEN, D)             # (250,)
    w2 = _kaiming_uniform(k_w2, HIDDEN, HIDDEN)     # (250, 250)
    b2 = _default_bias(k_b2, HIDDEN, HIDDEN)        # (250,)
    w3 = _kaiming_uniform(k_w3, 1, HIDDEN)          # (1, 250)
    y_hat = 0.1                                     # synthetic stand-in for frequency.mean()
    b3 = jnp.full((1,), y_hat, jnp.float32)

    # Pad / transpose / downcast weights once, outside the hot forward path.
    prepared = prepare_params(w1, b1, w2, b2, w3, b3)

    def check(x, out):
        ref_bf16 = _reference_forward_bf16(x, w1, b1, w2, b2, w3, b3)
        ref_f32 = _reference_forward_f32(x, w1, b1, w2, b2, w3, b3)
        assert out.shape == (x.shape[0], 1), out.shape
        # Tight check against a reference with matching bf16-operand numerics.
        assert jnp.allclose(out, ref_bf16, rtol=1e-3, atol=1e-3), (out, ref_bf16)
        # Loose sanity check against the exact f32 reference (bf16 operand rounding).
        assert jnp.allclose(out, ref_f32, rtol=5e-2, atol=5e-2), (out, ref_f32)

    # Case 1: small batch, single tile.
    x = jax.random.normal(k_x, (8, D), jnp.float32)
    out = jax.block_until_ready(neural_network_forward(x, prepared))
    check(x, out)

    # Case 2: multi-tile grid with a ragged last tile (3 tiles of 16 covering 40 rows),
    # no explicit batch-pad copy.
    x2 = jax.random.normal(k_x2, (40, D), jnp.float32)
    out2 = jax.block_until_ready(neural_network_forward(x2, prepared, batch_tile=16))
    check(x2, out2)

    # Case 3: batch not a multiple of 8 (13 rows -> 2 tiles of 8, partially ragged last tile).
    x3 = jax.random.normal(k_x3, (13, D), jnp.float32)
    out3 = jax.block_until_ready(neural_network_forward(x3, prepared))
    check(x3, out3)

    print("KERNEL_OK")
</pallas_src>

<mosaic_0001>
module attributes {stable_mosaic.version = 11 : i64} {
  func.func @mlp_kernel(%arg0: i32, %arg1: memref<8x32xf32, #tpu.memory_space<vmem>>, %arg2: memref<32x256xbf16, #tpu.memory_space<vmem>>, %arg3: memref<1x256xf32, #tpu.memory_space<vmem>>, %arg4: memref<256x256xbf16, #tpu.memory_space<vmem>>, %arg5: memref<1x256xf32, #tpu.memory_space<vmem>>, %arg6: memref<1x256xbf16, #tpu.memory_space<vmem>>, %arg7: memref<1x1xf32, #tpu.memory_space<vmem>>, %arg8: memref<1x1x8xf32, #tpu.memory_space<vmem>>) attributes {dimension_semantics = [#tpu.dimension_semantics<parallel>], iteration_bounds = array<i64: 1>, scalar_prefetch = 0 : i64, scratch_operands = 0 : i64, tpu.core_type = #tpu.core_type<tc>, window_params = [{transform_indices = @transform_0, window_bounds = array<i64: 8, 32>}, {pipeline_mode = #tpu.pipeline_mode<synchronous>, transform_indices = @transform_1, window_bounds = array<i64: 32, 256>}, {pipeline_mode = #tpu.pipeline_mode<synchronous>, transform_indices = @transform_2, window_bounds = array<i64: 1, 256>}, {pipeline_mode = #tpu.pipeline_mode<synchronous>, transform_indices = @transform_3, window_bounds = array<i64: 256, 256>}, {pipeline_mode = #tpu.pipeline_mode<synchronous>, transform_indices = @transform_4, window_bounds = array<i64: 1, 256>}, {pipeline_mode = #tpu.pipeline_mode<synchronous>, transform_indices = @transform_5, window_bounds = array<i64: 1, 256>}, {pipeline_mode = #tpu.pipeline_mode<synchronous>, transform_indices = @transform_6, window_bounds = array<i64: 1, 1>}, {transform_indices = @transform_7, window_bounds = array<i64: 1, 1, 8>}]} {
    %c0 = arith.constant 0 : index
    %c0_0 = arith.constant 0 : index
    %0 = vector.load %arg1[%c0, %c0_0] : memref<8x32xf32, #tpu.memory_space<vmem>>, vector<8x32xf32>
    %1 = arith.truncf %0 : vector<8x32xf32> to vector<8x32xbf16>
    %c0_1 = arith.constant 0 : index
    %c0_2 = arith.constant 0 : index
    %2 = vector.load %arg2[%c0_1, %c0_2] : memref<32x256xbf16, #tpu.memory_space<vmem>>, vector<32x256xbf16>
    %cst = arith.constant dense<0.000000e+00> : vector<8x256xf32>
    %3 = tpu.matmul %1, %2, %cst {dimension_numbers = #tpu.dot_dimension_numbers<[1], [0], [0], [1], [0, 0, 1, 1], [], []>} : vector<8x32xbf16>, vector<32x256xbf16>, vector<8x256xf32> -> vector<8x256xf32>
    %c0_3 = arith.constant 0 : index
    %c0_4 = arith.constant 0 : index
    %4 = vector.load %arg3[%c0_3, %c0_4] : memref<1x256xf32, #tpu.memory_space<vmem>>, vector<1x256xf32>
    %5 = vector.broadcast %4 : vector<1x256xf32> to vector<8x256xf32>
    %6 = arith.addf %3, %5 : vector<8x256xf32>
    %cst_5 = arith.constant 0.000000e+00 : f32
    %7 = vector.broadcast %cst_5 : f32 to vector<8x256xf32>
    %8 = arith.cmpf ogt, %6, %7 : vector<8x256xf32>
    %cst_6 = arith.constant 0.000000e+00 : f32
    %9 = vector.broadcast %cst_6 : f32 to vector<8x256xf32>
    %10 = arith.minimumf %6, %9 : vector<8x256xf32>
    %11 = math.exp %10 : vector<8x256xf32>
    %cst_7 = arith.constant 1.000000e+00 : f32
    %12 = vector.broadcast %cst_7 : f32 to vector<8x256xf32>
    %13 = arith.subf %11, %12 : vector<8x256xf32>
    %14 = arith.select %8, %6, %13 : vector<8x256xi1>, vector<8x256xf32>
    %15 = arith.truncf %14 : vector<8x256xf32> to vector<8x256xbf16>
    %c0_8 = arith.constant 0 : index
    %c0_9 = arith.constant 0 : index
    %16 = vector.load %arg4[%c0_8, %c0_9] : memref<256x256xbf16, #tpu.memory_space<vmem>>, vector<256x256xbf16>
    %cst_10 = arith.constant dense<0.000000e+00> : vector<8x256xf32>
    %17 = tpu.matmul %15, %16, %cst_10 {dimension_numbers = #tpu.dot_dimension_numbers<[1], [0], [0], [1], [0, 0, 1, 1], [], []>} : vector<8x256xbf16>, vector<256x256xbf16>, vector<8x256xf32> -> vector<8x256xf32>
    %c0_11 = arith.constant 0 : index
    %c0_12 = arith.constant 0 : index
    %18 = vector.load %arg5[%c0_11, %c0_12] : memref<1x256xf32, #tpu.memory_space<vmem>>, vector<1x256xf32>
    %19 = vector.broadcast %18 : vector<1x256xf32> to vector<8x256xf32>
    %20 = arith.addf %17, %19 : vector<8x256xf32>
    %cst_13 = arith.constant 0.000000e+00 : f32
    %21 = vector.broadcast %cst_13 : f32 to vector<8x256xf32>
    %22 = arith.cmpf ogt, %20, %21 : vector<8x256xf32>
    %cst_14 = arith.constant 0.000000e+00 : f32
    %23 = vector.broadcast %cst_14 : f32 to vector<8x256xf32>
    %24 = arith.minimumf %20, %23 : vector<8x256xf32>
    %25 = math.exp %24 : vector<8x256xf32>
    %cst_15 = arith.constant 1.000000e+00 : f32
    %26 = vector.broadcast %cst_15 : f32 to vector<8x256xf32>
    %27 = arith.subf %25, %26 : vector<8x256xf32>
    %28 = arith.select %22, %20, %27 : vector<8x256xi1>, vector<8x256xf32>
    %c0_16 = arith.constant 0 : index
    %c0_17 = arith.constant 0 : index
    %29 = vector.load %arg6[%c0_16, %c0_17] : memref<1x256xbf16, #tpu.memory_space<vmem>>, vector<1x256xbf16>
    %30 = arith.truncf %28 : vector<8x256xf32> to vector<8x256xbf16>
    %cst_18 = arith.constant dense<0.000000e+00> : vector<1x8xf32>
    %31 = tpu.matmul %29, %30, %cst_18 {dimension_numbers = #tpu.dot_dimension_numbers<[1], [1], [0], [0], [0, 0, 1, 0], [], []>} : vector<1x256xbf16>, vector<8x256xbf16>, vector<1x8xf32> -> vector<1x8xf32>
    %c0_19 = arith.constant 0 : index
    %c0_20 = arith.constant 0 : index
    %32 = vector.load %arg7[%c0_19, %c0_20] : memref<1x1xf32, #tpu.memory_space<vmem>>, vector<1x1xf32>
    %33 = vector.broadcast %32 : vector<1x1xf32> to vector<1x8xf32>
    %34 = arith.addf %31, %33 : vector<1x8xf32>
    %35 = math.exp %34 : vector<1x8xf32>
    %36 = vector.shape_cast %35 : vector<1x8xf32> to vector<1x1x8xf32>
    %c0_21 = arith.constant 0 : index
    %c0_22 = arith.constant 0 : index
    %c0_23 = arith.constant 0 : index
    %37 = vector.load %arg8[%c0_21, %c0_22, %c0_23] : memref<1x1x8xf32, #tpu.memory_space<vmem>>, vector<1x1x8xf32>
    tpu.vector_store %arg8[%c0_21, %c0_22, %c0_23], %36 {strides = array<i32>} : memref<1x1x8xf32, #tpu.memory_space<vmem>>, vector<1x1x8xf32>,
    return
  }
  func.func @transform_0(%arg0: i32) -> (i32, i32) {
    %c0_i32 = arith.constant 0 : i32
    %c0_i32_0 = arith.constant 0 : i32
    return %arg0, %c0_i32 : i32, i32
  }
  func.func @transform_1(%arg0: i32) -> (i32, i32) {
    %c0_i32 = arith.constant 0 : i32
    %c0_i32_0 = arith.constant 0 : i32
    %c0_i32_1 = arith.constant 0 : i32
    return %c0_i32, %c0_i32_0 : i32, i32
  }
  func.func @transform_2(%arg0: i32) -> (i32, i32) {
    %c0_i32 = arith.constant 0 : i32
    %c0_i32_0 = arith.constant 0 : i32
    %c0_i32_1 = arith.constant 0 : i32
    return %c0_i32, %c0_i32_0 : i32, i32
  }
  func.func @transform_3(%arg0: i32) -> (i32, i32) {
    %c0_i32 = arith.constant 0 : i32
    %c0_i32_0 = arith.constant 0 : i32
    %c0_i32_1 = arith.constant 0 : i32
    return %c0_i32, %c0_i32_0 : i32, i32
  }
  func.func @transform_4(%arg0: i32) -> (i32, i32) {
    %c0_i32 = arith.constant 0 : i32
    %c0_i32_0 = arith.constant 0 : i32
    %c0_i32_1 = arith.constant 0 : i32
    return %c0_i32, %c0_i32_0 : i32, i32
  }
  func.func @transform_5(%arg0: i32) -> (i32, i32) {
    %c0_i32 = arith.constant 0 : i32
    %c0_i32_0 = arith.constant 0 : i32
    %c0_i32_1 = arith.constant 0 : i32
    return %c0_i32, %c0_i32_0 : i32, i32
  }
  func.func @transform_6(%arg0: i32) -> (i32, i32) {
    %c0_i32 = arith.constant 0 : i32
    %c0_i32_0 = arith.constant 0 : i32
    %c0_i32_1 = arith.constant 0 : i32
    return %c0_i32, %c0_i32_0 : i32, i32
  }
  func.func @transform_7(%arg0: i32) -> (i32, i32, i32) {
    %c0_i32 = arith.constant 0 : i32
    %c0_i32_0 = arith.constant 0 : i32
    %c0_i32_1 = arith.constant 0 : i32
    return %arg0, %c0_i32, %c0_i32_0 : i32, i32, i32
  }
}

</mosaic_0001>

<llo_original>
// kernel: tpu_custom_call.1
$region0: #{tpu_custom_call.1}
  #allocation0 [shape = 'u32[]', space=smem, size = 0x4, offset = 0x4, fixed_abs, tag = 'smem constant byte address 0x4 - core index']
  #allocation1 [shape = 'u32[144,128]{1,0:T(1,128)}', space=vmem, size = 0x12000, scoped, tag = 'internal scratch']
  #allocation2 [shape = 'f32[1,1]{1,0:T(1,128)S(1)}', space=vmem, size = 0x200, scoped, tag = 'scoped memory for tpu_custom_call.1']
  %s0 = inlined_call_operand.hbm [shape: f32[8,32], index: 0, kind: input, shape index: {}]
  %s1 = inlined_call_operand.hbm [shape: bf16[32,256], index: 1, kind: input, shape index: {}]
  %s2 = inlined_call_operand.vmem [shape: f32[1,256], index: 2, kind: input, shape index: {}]
  %s3 = inlined_call_operand.hbm [shape: bf16[256,256], index: 3, kind: input, shape index: {}]
  %s4 = inlined_call_operand.vmem [shape: f32[1,256], index: 4, kind: input, shape index: {}]
  %s5 = inlined_call_operand.vmem [shape: bf16[1,256], index: 5, kind: input, shape index: {}]
  %s6 = inlined_call_operand.<no memory space> [shape: f32[1,1], index: 6, kind: input, shape index: {}]
  %s7 = inlined_call_operand.hbm [shape: f32[1,1,8], index: 7, kind: output, shape index: {}]
  %s8 = sld [smem:[#allocation0]]
  $region50: #{tpu_custom_call.1} parent=0
    _
  %s10 = ssub.s32 1, %s8
  %s11 = scalar_select 0, %s10, %s8
  %v12 = vstv %s6
  %13 = vst [vmem:[#allocation2] sm:$0x1] %v12
  $region1: #{tpu_custom_call.1} parent=0
    #allocation3 [shape = 'u8[4096]{0}', space=vmem, size = 0x1000, scoped, tag = 'input window, operand 0, single buffered']
    #allocation4 [shape = 's32[1]{0}', space=sflag, size = 0x4, scoped, tag = 'scoped memory for tpu_custom_call.1']
    #allocation5 [shape = 's32[1]{0}', space=sflag, size = 0x4, scoped, tag = 'scoped memory for tpu_custom_call.1']
    #allocation6 [shape = 'u8[16384]{0}', space=vmem, size = 0x4000, scoped, tag = 'input window, operand 1, single buffered']
    #allocation7 [shape = 's32[1]{0}', space=sflag, size = 0x4, scoped, tag = 'scoped memory for tpu_custom_call.1']
    #allocation8 [shape = 'u8[131072]{0}', space=vmem, size = 0x20000, scoped, tag = 'input window, operand 3, single buffered']
    #allocation9 [shape = 'u8[512]{0}', space=vmem, size = 0x400, scoped, tag = 'output window, operand 0, single buffered']
    %14 = vsyncpa [#allocation4], 0
    %15 = vsyncpa [#allocation7], 0
    %16 = vsyncpa [#allocation5], 0
    // Predicated region
    $region2: #{tpu_custom_call.1} parent=1 // pred_check
      _
    $region3: #{tpu_custom_call.1} parent=1 // pred_check_branch
      %18 = sbr.rel (0) target = $region5
    $region4: #{tpu_custom_call.1} parent=1 // pred_region
      %s20 = ssub.s32 128, 128
      %21 = vsyncadd [#allocation4], %s20
      %s23 = sshll.u32 [#allocation3], 4
      %s24 = int_to_ptr.vmem [resolvable:$true] %s23
      %26 = dma.hbm_to_vmem [thread:$0]  %s0, 128, %s24, [#allocation4]
    $region5: #{tpu_custom_call.1} parent=1 // pred_fallthru
      _
    // Predicated region
    $region6: #{tpu_custom_call.1} parent=1 // pred_check
      _
    $region7: #{tpu_custom_call.1} parent=1 // pred_check_branch
      %28 = sbr.rel (0) target = $region9
    $region8: #{tpu_custom_call.1} parent=1 // pred_region
      %s30 = ssub.s32 512, 512
      %31 = vsyncadd [#allocation7], %s30
      %s32 = sshll.u32 [#allocation6], 4
      %s33 = int_to_ptr.vmem [resolvable:$true] %s32
      %38 = dma.hbm_to_vmem [thread:$0]  %s1, 512, %s33, [#allocation7], 128, 128, 8
    $region9: #{tpu_custom_call.1} parent=1 // pred_fallthru
      _
    // Predicated region
    $region10: #{tpu_custom_call.1} parent=1 // pred_check
      _
    $region11: #{tpu_custom_call.1} parent=1 // pred_check_branch
      %40 = sbr.rel (0) target = $region13
    $region12: #{tpu_custom_call.1} parent=1 // pred_region
      _
    $region13: #{tpu_custom_call.1} parent=1 // pred_fallthru
      _
    // Predicated region
    $region14: #{tpu_custom_call.1} parent=1 // pred_check
      _
    $region15: #{tpu_custom_call.1} parent=1 // pred_check_branch
      %42 = sbr.rel (0) target = $region17
    $region16: #{tpu_custom_call.1} parent=1 // pred_region
      %s44 = ssub.s32 4096, 4096
      %45 = vsyncadd [#allocation7], %s44
      %s46 = sshll.u32 [#allocation8], 4
      %s47 = int_to_ptr.vmem [resolvable:$true] %s46
      %52 = dma.hbm_to_vmem [thread:$0]  %s3, 4096, %s47, [#allocation7], 128, 128, 8
    $region17: #{tpu_custom_call.1} parent=1 // pred_fallthru
      _
    // Predicated region
    $region18: #{tpu_custom_call.1} parent=1 // pred_check
      _
    $region19: #{tpu_custom_call.1} parent=1 // pred_check_branch
      %54 = sbr.rel (0) target = $region21
    $region20: #{tpu_custom_call.1} parent=1 // pred_region
      _
    $region21: #{tpu_custom_call.1} parent=1 // pred_fallthru
      _
    // Predicated region
    $region22: #{tpu_custom_call.1} parent=1 // pred_check
      _
    $region23: #{tpu_custom_call.1} parent=1 // pred_check_branch
      %56 = sbr.rel (0) target = $region25
    $region24: #{tpu_custom_call.1} parent=1 // pred_region
      _
    $region25: #{tpu_custom_call.1} parent=1 // pred_fallthru
      _
    // Predicated region
    $region26: #{tpu_custom_call.1} parent=1 // pred_check
      _
    $region27: #{tpu_custom_call.1} parent=1 // pred_check_branch
      %58 = sbr.rel (0) target = $region29
    $region28: #{tpu_custom_call.1} parent=1 // pred_region
      _
    $region29: #{tpu_custom_call.1} parent=1 // pred_fallthru
      _
    // Predicated region
    $region30: #{tpu_custom_call.1} parent=1 // pred_check
      _
    $region31: #{tpu_custom_call.1} parent=1 // pred_check_branch
      %60 = sbr.rel (0) target = $region33
    $region32: #{tpu_custom_call.1} parent=1 // pred_region
      %61 = dma.done [#allocation4], 128
    $region33: #{tpu_custom_call.1} parent=1 // pred_fallthru
      _
    // Predicated region
    $region34: #{tpu_custom_call.1} parent=1 // pred_check
      _
    $region35: #{tpu_custom_call.1} parent=1 // pred_check_branch
      %63 = sbr.rel (0) target = $region37
    $region36: #{tpu_custom_call.1} parent=1 // pred_region
      %64 = dma.done [#allocation7], 512
    $region37: #{tpu_custom_call.1} parent=1 // pred_fallthru
      _
    // Predicated region
    $region38: #{tpu_custom_call.1} parent=1 // pred_check
      _
    $region39: #{tpu_custom_call.1} parent=1 // pred_check_branch
      %66 = sbr.rel (0) target = $region41
    $region40: #{tpu_custom_call.1} parent=1 // pred_region
      %67 = dma.done [#allocation7], 4096
    $region41: #{tpu_custom_call.1} parent=1 // pred_fallthru
      _
    %v69 = vld [vmem:[#allocation3] sm:$0xff]
    %v70 = vpack.c.bf16 %v69, %v69
    %v71 = vld [vmem:[#allocation6] sm:$0xff]
    %v72 = vld [vmem:[#allocation6 + $0x8] sm:$0xff]
    %v73 = vld [vmem:[#allocation6 + $0x10] sm:$0xff]
    %v74 = vld [vmem:[#allocation6 + $0x18] sm:$0xff]
    %v75 = vld [vmem:[%s2] sm:$0x3]
    %v77 = vlaneseq
    %v78 = vshrl.u32 %v77, 7
    %v79 = vsub.s32 0, %v78
    %v80 = vrot.slane %v75, %v79
    %v81 = vlaneseq
    %v82 = vshrl.u32 %v81, 7
    %v83 = vsub.s32 1, %v82
    %v84 = vrot.slane %v75, %v83
    %v91 = vunpack.c.l.b16 %v71
    %v92 = vunpack.c.h.b16 %v71
    %v93 = vunpack.c.l.b16 %v72
    %v94 = vunpack.c.h.b16 %v72
    %v95 = vunpack.c.l.b16 %v73
    %v96 = vunpack.c.h.b16 %v73
    %v97 = vunpack.c.l.b16 %v74
    %v98 = vunpack.c.h.b16 %v74
    %v99 = vpack.c.b16 %v93, %v91
    %v100 = vpack.c.b16 %v94, %v92
    %v101 = vpack.c.b16 %v97, %v95
    %v102 = vpack.c.b16 %v98, %v96
    %vm107 = vcmask 261120
    %v109 = vsel %vm107, %v70, 0
    %111 = vmatprep.subr.bf16.mxu0 %v100
    %112 = vmatpush1.bf16.msra.mxu0 %v99
    %113 = vmatprep.subr.bf16.mxu0 %v102
    %114 = vmatpush1.bf16.msra.mxu0 %v101
    %115 = vmatprep.subr.bf16.mxu0 0
    %116 = vmatpush1.bf16.msra.mxu0 0
    %117 = vmatprep.subr.bf16.mxu0 0
    %118 = vmatpush1.bf16.msra.mxu0 0
    %119 = vmatprep.subr.bf16.mxu0 0
    %120 = vmatpush1.bf16.msra.mxu0 0
    %121 = vmatprep.subr.bf16.mxu0 0
    %122 = vmatpush1.bf16.msra.mxu0 0
    %123 = vmatprep.subr.bf16.mxu0 0
    %124 = vmatpush1.bf16.msra.mxu0 0
    %125 = vmatprep.subr.bf16.mxu0 0
    %126 = vmatpush1.bf16.msra.mxu0 0
    %127 = vmatprep.subr.bf16.mxu0 0
    %128 = vmatpush1.bf16.msra.mxu0 0
    %129 = vmatprep.subr.bf16.mxu0 0
    %130 = vmatpush1.bf16.msra.mxu0 0
    %131 = vmatprep.subr.bf16.mxu0 0
    %132 = vmatpush1.bf16.msra.mxu0 0
    %133 = vmatprep.subr.bf16.mxu0 0
    %134 = vmatpush1.bf16.msra.mxu0 0
    %135 = vmatprep.subr.bf16.mxu0 0
    %136 = vmatpush1.bf16.msra.mxu0 0
    %137 = vmatprep.subr.bf16.mxu0 0
    %138 = vmatpush1.bf16.msra.mxu0 0
    %139 = vmatprep.subr.bf16.mxu0 0
    %140 = vmatpush1.bf16.msra.mxu0 0
    %141 = vmatprep.subr.bf16.mxu0 0
    %142 = vmatpush1.bf16.msra.mxu0 0
    %143 = vmatprep.mubr.bf16.mxu0 0
    %144 = vmatmul.mubr.bf16.gmra.mrb[0].mxu0 %v109
    %v145 = vpop.f32.mrb[0].mxu0
    %v146 = vadd.f32 %v80, %v145
    %v147 = vpop.f32.mrb[0].mxu0
    %v148 = vadd.f32 %v84, %v147
    %v149 = vpop.f32.mrb[0].mxu0
    %v150 = vpop.f32.mrb[0].mxu0
    %151 = vdwg.mxu0
    %vm152 = vcmp.gt.f32.partialorder %v146, 0.0
    %vm153 = vcmp.gt.f32.partialorder %v148, 0.0
    %v154 = vmin.f32 %v146, 0.0
    %v155 = vmin.f32 %v148, 0.0
    %v156 = vmul.f32 %v154, 1.442695
    %v157 = vpow.pop %v156
    %v158 = vmul.f32 %v155, 1.442695
    %v159 = vpow.pop %v158
    %v160 = vsub.f32 %v157, 1.0
    %v161 = vsub.f32 %v159, 1.0
    %v162 = vsel %vm152, %v146, %v160
    %v163 = vsel %vm153, %v148, %v161
    %v164 = vpack.c.bf16 %v162, %v162
    %v165 = vpack.c.bf16 %v163, %v163
    %v166 = vld [vmem:[#allocation8] sm:$0xff]
    %v167 = vld [vmem:[#allocation8 + $0x8] sm:$0xff]
    %v168 = vld [vmem:[#allocation8 + $0x10] sm:$0xff]
    %v169 = vld [vmem:[#allocation8 + $0x18] sm:$0xff]
    %v170 = vld [vmem:[#allocation8 + $0x20] sm:$0xff]
    %v171 = vld [vmem:[#allocation8 + $0x28] sm:$0xff]
    %v172 = vld [vmem:[#allocation8 + $0x30] sm:$0xff]
    %v173 = vld [vmem:[#allocation8 + $0x38] sm:$0xff]
    %v174 = vld [vmem:[#allocation8 + $0x40] sm:$0xff]
    %v175 = vld [vmem:[#allocation8 + $0x48] sm:$0xff]
    %v176 = vld [vmem:[#allocation8 + $0x50] sm:$0xff]
    %v177 = vld [vmem:[#allocation8 + $0x58] sm:$0xff]
    %v178 = vld [vmem:[#allocation8 + $0x60] sm:$0xff]
    %v179 = vld [vmem:[#allocation8 + $0x68] sm:$0xff]
    %v180 = vld [vmem:[#allocation8 + $0x70] sm:$0xff]
    %v181 = vld [vmem:[#allocation8 + $0x78] sm:$0xff]
    %v182 = vld [vmem:[#allocation8 + $0x80] sm:$0xff]
    %v183 = vld [vmem:[#allocation8 + $0x88] sm:$0xff]
    %v184 = vld [vmem:[#allocation8 + $0x90] sm:$0xff]
    %v185 = vld [vmem:[#allocation8 + $0x98] sm:$0xff]
    %v186 = vld [vmem:[#allocation8 + $0xa0] sm:$0xff]
    %v187 = vld [vmem:[#allocation8 + $0xa8] sm:$0xff]
    %v188 = vld [vmem:[#allocation8 + $0xb0] sm:$0xff]
    %v189 = vld [vmem:[#allocation8 + $0xb8] sm:$0xff]
    %v190 = vld [vmem:[#allocation8 + $0xc0] sm:$0xff]
    %v191 = vld [vmem:[#allocation8 + $0xc8] sm:$0xff]
    %v192 = vld [vmem:[#allocation8 + $0xd0] sm:$0xff]
    %v193 = vld [vmem:[#allocation8 + $0xd8] sm:$0xff]
    %v194 = vld [vmem:[#allocation8 + $0xe0] sm:$0xff]
    %v195 = vld [vmem:[#allocation8 + $0xe8] sm:$0xff]
    %v196 = vld [vmem:[#allocation8 + $0xf0] sm:$0xff]
    %v197 = vld [vmem:[#allocation8 + $0xf8] sm:$0xff]
    %v198 = vld [vmem:[%s4] sm:$0x3]
    %v200 = vlaneseq
    %v201 = vshrl.u32 %v200, 7
    %v202 = vsub.s32 0, %v201
    %v203 = vrot.slane %v198, %v202
    %v204 = vlaneseq
    %v205 = vshrl.u32 %v204, 7
    %v206 = vsub.s32 1, %v205
    %v207 = vrot.slane %v198, %v206
    %v242 = vunpack.c.l.b16 %v166
    %v243 = vunpack.c.h.b16 %v166
    %v244 = vunpack.c.l.b16 %v167
    %v245 = vunpack.c.h.b16 %v167
    %v246 = vunpack.c.l.b16 %v168
    %v247 = vunpack.c.h.b16 %v168
    %v248 = vunpack.c.l.b16 %v169
    %v249 = vunpack.c.h.b16 %v169
    %v250 = vunpack.c.l.b16 %v170
    %v251 = vunpack.c.h.b16 %v170
    %v252 = vunpack.c.l.b16 %v171
    %v253 = vunpack.c.h.b16 %v171
    %v254 = vunpack.c.l.b16 %v172
    %v255 = vunpack.c.h.b16 %v172
    %v256 = vunpack.c.l.b16 %v173
    %v257 = vunpack.c.h.b16 %v173
    %v258 = vunpack.c.l.b16 %v174
    %v259 = vunpack.c.h.b16 %v174
    %v260 = vunpack.c.l.b16 %v175
    %v261 = vunpack.c.h.b16 %v175
    %v262 = vunpack.c.l.b16 %v176
    %v263 = vunpack.c.h.b16 %v176
    %v264 = vunpack.c.l.b16 %v177
    %v265 = vunpack.c.h.b16 %v177
    %v266 = vunpack.c.l.b16 %v178
    %v267 = vunpack.c.h.b16 %v178
    %v268 = vunpack.c.l.b16 %v179
    %v269 = vunpack.c.h.b16 %v179
    %v270 = vunpack.c.l.b16 %v180
    %v271 = vunpack.c.h.b16 %v180
    %v272 = vunpack.c.l.b16 %v181
    %v273 = vunpack.c.h.b16 %v181
    %v274 = vunpack.c.l.b16 %v182
    %v275 = vunpack.c.h.b16 %v182
    %v276 = vunpack.c.l.b16 %v183
    %v277 = vunpack.c.h.b16 %v183
    %v278 = vunpack.c.l.b16 %v184
    %v279 = vunpack.c.h.b16 %v184
    %v280 = vunpack.c.l.b16 %v185
    %v281 = vunpack.c.h.b16 %v185
    %v282 = vunpack.c.l.b16 %v186
    %v283 = vunpack.c.h.b16 %v186
    %v284 = vunpack.c.l.b16 %v187
    %v285 = vunpack.c.h.b16 %v187
    %v286 = vunpack.c.l.b16 %v188
    %v287 = vunpack.c.h.b16 %v188
    %v288 = vunpack.c.l.b16 %v189
    %v289 = vunpack.c.h.b16 %v189
    %v290 = vunpack.c.l.b16 %v190
    %v291 = vunpack.c.h.b16 %v190
    %v292 = vunpack.c.l.b16 %v191
    %v293 = vunpack.c.h.b16 %v191
    %v294 = vunpack.c.l.b16 %v192
    %v295 = vunpack.c.h.b16 %v192
    %v296 = vunpack.c.l.b16 %v193
    %v297 = vunpack.c.h.b16 %v193
    %v298 = vunpack.c.l.b16 %v194
    %v299 = vunpack.c.h.b16 %v194
    %v300 = vunpack.c.l.b16 %v195
    %v301 = vunpack.c.h.b16 %v195
    %v302 = vunpack.c.l.b16 %v196
    %v303 = vunpack.c.h.b16 %v196
    %v304 = vunpack.c.l.b16 %v197
    %v305 = vunpack.c.h.b16 %v197
    %v306 = vpack.c.b16 %v244, %v242
    %v307 = vpack.c.b16 %v245, %v243
    %v308 = vpack.c.b16 %v248, %v246
    %v309 = vpack.c.b16 %v249, %v247
    %v310 = vpack.c.b16 %v252, %v250
    %v311 = vpack.c.b16 %v253, %v251
    %v312 = vpack.c.b16 %v256, %v254
    %v313 = vpack.c.b16 %v257, %v255
    %v314 = vpack.c.b16 %v260, %v258
    %v315 = vpack.c.b16 %v261, %v259
    %v316 = vpack.c.b16 %v264, %v262
    %v317 = vpack.c.b16 %v265, %v263
    %v318 = vpack.c.b16 %v268, %v266
    %v319 = vpack.c.b16 %v269, %v267
    %v320 = vpack.c.b16 %v272, %v270
    %v321 = vpack.c.b16 %v273, %v271
    %v322 = vpack.c.b16 %v276, %v274
    %v323 = vpack.c.b16 %v277, %v275
    %v324 = vpack.c.b16 %v280, %v278
    %v325 = vpack.c.b16 %v281, %v279
    %v326 = vpack.c.b16 %v284, %v282
    %v327 = vpack.c.b16 %v285, %v283
    %v328 = vpack.c.b16 %v288, %v286
    %v329 = vpack.c.b16 %v289, %v287
    %v330 = vpack.c.b16 %v292, %v290
    %v331 = vpack.c.b16 %v293, %v291
    %v332 = vpack.c.b16 %v296, %v294
    %v333 = vpack.c.b16 %v297, %v295
    %v334 = vpack.c.b16 %v300, %v298
    %v335 = vpack.c.b16 %v301, %v299
    %v336 = vpack.c.b16 %v304, %v302
    %v337 = vpack.c.b16 %v305, %v303
    %370 = vmatprep.subr.bf16.mxu0 %v307
    %371 = vmatpush1.bf16.msra.mxu0 %v306
    %372 = vmatprep.subr.bf16.mxu0 %v309
    %373 = vmatpush1.bf16.msra.mxu0 %v308
    %374 = vmatprep.subr.bf16.mxu0 %v311
    %375 = vmatpush1.bf16.msra.mxu0 %v310
    %376 = vmatprep.subr.bf16.mxu0 %v313
    %377 = vmatpush1.bf16.msra.mxu0 %v312
    %378 = vmatprep.subr.bf16.mxu0 %v315
    %379 = vmatpush1.bf16.msra.mxu0 %v314
    %380 = vmatprep.subr.bf16.mxu0 %v317
    %381 = vmatpush1.bf16.msra.mxu0 %v316
    %382 = vmatprep.subr.bf16.mxu0 %v319
    %383 = vmatpush1.bf16.msra.mxu0 %v318
    %384 = vmatprep.subr.bf16.mxu0 %v321
    %385 = vmatpush1.bf16.msra.mxu0 %v320
    %386 = vmatprep.subr.bf16.mxu0 %v323
    %387 = vmatpush1.bf16.msra.mxu0 %v322
    %388 = vmatprep.subr.bf16.mxu0 %v325
    %389 = vmatpush1.bf16.msra.mxu0 %v324
    %390 = vmatprep.subr.bf16.mxu0 %v327
    %391 = vmatpush1.bf16.msra.mxu0 %v326
    %392 = vmatprep.subr.bf16.mxu0 %v329
    %393 = vmatpush1.bf16.msra.mxu0 %v328
    %394 = vmatprep.subr.bf16.mxu0 %v331
    %395 = vmatpush1.bf16.msra.mxu0 %v330
    %396 = vmatprep.subr.bf16.mxu0 %v333
    %397 = vmatpush1.bf16.msra.mxu0 %v332
    %398 = vmatprep.subr.bf16.mxu0 %v335
    %399 = vmatpush1.bf16.msra.mxu0 %v334
    %400 = vmatprep.subr.bf16.mxu0 %v337
    %401 = vmatpush1.bf16.msra.mxu0 %v336
    %402 = vmatprep.mubr.bf16.mxu0 %v165
    %403 = vmatmul.mubr.bf16.gmra.mrb[0].mxu0 %v164
    %v404 = vpop.f32.mrb[0].mxu0
    %v405 = vadd.f32 %v203, %v404
    %v406 = vpop.f32.mrb[0].mxu0
    %v407 = vadd.f32 %v207, %v406
    %v408 = vpop.f32.mrb[0].mxu0
    %v409 = vpop.f32.mrb[0].mxu0
    %410 = vdwg.mxu0
    %vm411 = vcmp.gt.f32.partialorder %v405, 0.0
    %vm412 = vcmp.gt.f32.partialorder %v407, 0.0
    %v413 = vmin.f32 %v405, 0.0
    %v414 = vmin.f32 %v407, 0.0
    %v415 = vmul.f32 %v413, 1.442695
    %v416 = vpow.pop %v415
    %v417 = vmul.f32 %v414, 1.442695
    %v418 = vpow.pop %v417
    %v419 = vsub.f32 %v416, 1.0
    %v420 = vsub.f32 %v418, 1.0
    %v421 = vsel %vm411, %v405, %v419
    %v422 = vsel %vm412, %v407, %v420
    %v423 = vld [vmem:[%s5] sm:$0x3]
    %v424 = vpack.c.bf16 %v421, %v421
    %v425 = vpack.c.bf16 %v422, %v422
    %v426 = vld [vmem:[#allocation2] sm:$0x1]
    %428 = vset.pattern.permute.xlu0 0
    %429 = vperm.xlu0 %428, %v426
    %v430 = vpop.permute.xlu0 %429
    %v432 = vlaneseq
    %v433 = vshrl.u32 %v432, 7
    %v434 = vsub.s32 0, %v433
    %v435 = vrot.slane %v430, %v434
    %v438 = vunpack.c.l.s4 1966171168
    %v439 = vunpack.c.0.s8 %v438
    %v440 = vlaneseq
    %v441 = vshrl.u32 %v440, 7
    %v442 = vsub.s32 %v439, %v441
    %v443 = vrot.slane %v423, %v442
    %v444 = vcombine.high %v443, %v443
    %v446 = vunpack.c.l.s4 1966171168
    %v447 = vunpack.c.0.s8 %v446
    %v448 = vlaneseq
    %v449 = vshrl.u32 %v448, 7
    %v450 = vsub.s32 %v447, %v449
    %v451 = vrot.slane %v443, %v450
    %v453 = vunpack.c.l.s4 1966171168
    %v454 = vunpack.c.0.s8 %v453
    %v455 = vlaneseq
    %v456 = vshrl.u32 %v455, 7
    %v457 = vsub.s32 %v454, %v456
    %v458 = vrot.slane %v444, %v457
    %461 = vmatprep.subr.bf16.mxu0 %v425
    %462 = vmatpush1.bf16.xpose.msra.mxu0 %v424
    %463 = vmatprep.subr.bf16.mxu0 0
    %464 = vmatpush1.bf16.xpose.msra.mxu0 0
    %465 = vmatprep.subr.bf16.mxu0 0
    %466 = vmatpush1.bf16.xpose.msra.mxu0 0
    %467 = vmatprep.subr.bf16.mxu0 0
    %468 = vmatpush1.bf16.xpose.msra.mxu0 0
    %469 = vmatprep.subr.bf16.mxu0 0
    %470 = vmatpush1.bf16.xpose.msra.mxu0 0
    %471 = vmatprep.subr.bf16.mxu0 0
    %472 = vmatpush1.bf16.xpose.msra.mxu0 0
    %473 = vmatprep.subr.bf16.mxu0 0
    %474 = vmatpush1.bf16.xpose.msra.mxu0 0
    %475 = vmatprep.subr.bf16.mxu0 0
    %476 = vmatpush1.bf16.xpose.msra.mxu0 0
    %477 = vmatprep.subr.bf16.mxu0 0
    %478 = vmatpush1.bf16.xpose.msra.mxu0 0
    %479 = vmatprep.subr.bf16.mxu0 0
    %480 = vmatpush1.bf16.xpose.msra.mxu0 0
    %481 = vmatprep.subr.bf16.mxu0 0
    %482 = vmatpush1.bf16.xpose.msra.mxu0 0
    %483 = vmatprep.subr.bf16.mxu0 0
    %484 = vmatpush1.bf16.xpose.msra.mxu0 0
    %485 = vmatprep.subr.bf16.mxu0 0
    %486 = vmatpush1.bf16.xpose.msra.mxu0 0
    %487 = vmatprep.subr.bf16.mxu0 0
    %488 = vmatpush1.bf16.xpose.msra.mxu0 0
    %489 = vmatprep.subr.bf16.mxu0 0
    %490 = vmatpush1.bf16.xpose.msra.mxu0 0
    %491 = vmatprep.subr.bf16.mxu0 0
    %492 = vmatpush1.bf16.xpose.msra.mxu0 0
    %493 = vmatprep.mubr.bf16.mxu0 %v458
    %494 = vmatmul.mubr.bf16.gmra.mrb[0].mxu0 %v451
    %v495 = vpop.f32.mrb[0].mxu0
    %v496 = vadd.f32 %v435, %v495
    %v497 = vpop.f32.mrb[0].mxu0
    %v498 = vpop.f32.mrb[0].mxu0
    %v499 = vpop.f32.mrb[0].mxu0
    %500 = vdwg.mxu0
    %v501 = vmul.f32 %v496, 1.442695
    %v502 = vpow.pop %v501
    %vm503 = vcmask 57344
    %504 = vst.msk [vmem:[#allocation9] sm:$0x1] %vm503, %v502
    // Predicated region
    $region42: #{tpu_custom_call.1} parent=1 // pred_check
      _
    $region43: #{tpu_custom_call.1} parent=1 // pred_check_branch
      %506 = sbr.rel (0) target = $region45
    $region44: #{tpu_custom_call.1} parent=1 // pred_region
      %s508 = ssub.s32 16, 16
      %509 = vsyncadd [#allocation5], %s508
      %s511 = sshll.u32 [#allocation9], 4
      %s512 = int_to_ptr.vmem [resolvable:$true] %s511
      %514 = dma.vmem_to_hbm [thread:$0]  %s512, 16, %s7, [#allocation5]
    $region45: #{tpu_custom_call.1} parent=1 // pred_fallthru
      _
    // Predicated region
    $region46: #{tpu_custom_call.1} parent=1 // pred_check
      _
    $region47: #{tpu_custom_call.1} parent=1 // pred_check_branch
      %516 = sbr.rel (0) target = $region49
    $region48: #{tpu_custom_call.1} parent=1 // pred_region
      %517 = dma.done [#allocation5], 16
    $region49: #{tpu_custom_call.1} parent=1 // pred_fallthru
      _
    %518 = vsyncpa [#allocation4], 1
    %519 = vsyncpa [#allocation7], 1
    %520 = vsyncpa [#allocation5], 1

</llo_original>
